<compile_context>
chip_gen: v6e
topology: v6e:2x2x1
jax: 0.10.0
libtpu: 0.0.40
codegen_flags: <defaults>
</compile_context>

<pallas_src>
import math

import jax
import jax.numpy as jnp
from jax.experimental import pallas as pl
from jax.experimental.pallas import tpu as pltpu


def make_pe_1d(max_len: int, d_model: int) -> jnp.ndarray:
    """Deterministic sinusoidal table, identical to the torch buffer `pe_1d`."""
    position = jnp.arange(max_len, dtype=jnp.float32)[:, None]            # [L, 1]
    div_term = jnp.exp(
        jnp.arange(0, d_model, 2, dtype=jnp.float32) * (-math.log(10000.0) / d_model)
    )                                                                      # [E/2]
    ang = position * div_term                                              # [L, E/2]
    pe = jnp.zeros((max_len, d_model), dtype=jnp.float32)
    pe = pe.at[:, 0::2].set(jnp.sin(ang))
    pe = pe.at[:, 1::2].set(jnp.cos(ang))
    return pe


def _add_pe_kernel(x_ref, pe_ref, o_ref):
    # x_ref/o_ref: (tb, ...); pe_ref: (1, ...) -> broadcast add, pure VPU.
    o_ref[...] = x_ref[...] + pe_ref[...]


def _sublane_multiple(itemsize: int) -> int:
    return {4: 8, 2: 16, 1: 32}.get(itemsize, 8)


def _pick_batch_tile(B: int, itemsize: int) -> int:
    """Batch tile: dtype-aware sublane multiple dividing B, else full batch."""
    sub = _sublane_multiple(itemsize)
    if B >= sub and B % sub == 0:
        return sub
    if B >= 8 and B % 8 == 0:
        return 8
    return B  # full-extent is always legal


def _pick_lane_tile(B: int, tb: int, L: int, itemsize: int, block_bytes: int) -> int:
    """Lane tile: multiple of 128 dividing L, sized for ~block_bytes per x block."""
    cap = max(128, (block_bytes // (tb * itemsize)) // 128 * 128)
    cap = min(cap, L)
    # Only force >= 2 lane tiles (for v7x's two TensorCores) when the batch grid
    # axis is 1; otherwise the batch axis already provides parallel blocks.
    if (B // tb) == 1 and L >= 256:
        cap = min(cap, max(128, (L // 2) // 128 * 128))
    tl = cap
    while L % tl != 0:
        tl -= 128
    return tl


def _pick_seq_tile(B: int, tb: int, FT: int, E: int, itemsize: int, block_bytes: int) -> int:
    """3-D fallback: tile along F*T (multiple of 8 dividing FT), E full-extent."""
    if FT % 8 != 0 or FT < 8:
        return FT  # full-extent (small/odd cases only)
    cap = max(8, (block_bytes // (tb * E * itemsize)) // 8 * 8)
    cap = min(cap, FT)
    if (B // tb) == 1 and FT >= 16:
        cap = min(cap, max(8, (FT // 2) // 8 * 8))
    t_ft = cap
    while FT % t_ft != 0:
        t_ft -= 8
    return t_ft


_BLOCK_BYTES = 2 * 1024 * 1024  # ~2 MiB per x block -> ~8-9 MiB VMEM footprint
_COMPILER_PARAMS = pltpu.CompilerParams(
    dimension_semantics=("parallel", "parallel"),
    vmem_limit_bytes=32 * 1024 * 1024,
)


def freq2d_positional_encoding(x, pe_1d, freq_dim: int, time_dim: int):
    """x: [B, F*T, E]. Returns x + pe_2d (dropout in eval mode = identity)."""
    B, FT, E = x.shape
    assert FT == freq_dim * time_dim, "sequence length must equal freq_dim * time_dim"
    itemsize = jnp.dtype(x.dtype).itemsize

    # Tiny pe_2d table built in plain JAX: sum in f32, cast ONCE to x.dtype.
    pe_f = pe_1d[:freq_dim].astype(jnp.float32)               # [F, E]
    pe_t = pe_1d[:time_dim].astype(jnp.float32)               # [T, E]
    pe_2d_f32 = pe_f[:, None, :] + pe_t[None, :, :]           # [F, T, E]
    pe_2d = pe_2d_f32.reshape(FT, E).astype(x.dtype)          # [F*T, E]

    tb = _pick_batch_tile(B, itemsize)
    L = FT * E

    if L % 128 == 0:
        # Lane-dense 2-D path: flatten trailing (FT, E) axes.
        x2 = x.reshape(B, L)
        pe2 = pe_2d.reshape(1, L)
        tl = _pick_lane_tile(B, tb, L, itemsize, _BLOCK_BYTES)
        # Lane axis OUTER, batch axis INNER -> pe block index constant across
        # consecutive inner steps (no redundant pe re-fetch).
        grid = (L // tl, B // tb)
        out2 = pl.pallas_call(
            _add_pe_kernel,
            out_shape=jax.ShapeDtypeStruct((B, L), x.dtype),
            grid_spec=pl.GridSpec(
                grid=grid,
                in_specs=[
                    pl.BlockSpec((tb, tl), lambda j, i: (i, j)),   # x slab
                    pl.BlockSpec((1, tl), lambda j, i: (0, j)),    # pe slab
                ],
                out_specs=pl.BlockSpec((tb, tl), lambda j, i: (i, j)),
            ),
            input_output_aliases={0: 0},
            compiler_params=_COMPILER_PARAMS,
        )(x2, pe2)
        return out2.reshape(B, FT, E)

    # Robust 3-D fallback (E not 128-aligned): tile along F*T, E full-extent.
    pe3 = pe_2d.reshape(1, FT, E)
    t_ft = _pick_seq_tile(B, tb, FT, E, itemsize, _BLOCK_BYTES)
    grid = (FT // t_ft, B // tb)   # seq axis outer, batch inner
    out = pl.pallas_call(
        _add_pe_kernel,
        out_shape=jax.ShapeDtypeStruct((B, FT, E), x.dtype),
        grid_spec=pl.GridSpec(
            grid=grid,
            in_specs=[
                pl.BlockSpec((tb, t_ft, E), lambda s, i: (i, s, 0)),   # x slab
                pl.BlockSpec((1, t_ft, E), lambda s, i: (0, s, 0)),    # pe slab
            ],
            out_specs=pl.BlockSpec((tb, t_ft, E), lambda s, i: (i, s, 0)),
        ),
        input_output_aliases={0: 0},
        compiler_params=_COMPILER_PARAMS,
    )(x, pe3)
    return out


def reference(x, pe_1d, freq_dim, time_dim):
    pe_f = pe_1d[:freq_dim].astype(jnp.float32)
    pe_t = pe_1d[:time_dim].astype(jnp.float32)
    pe_2d = (pe_f[:, None, :] + pe_t[None, :, :]).reshape(freq_dim * time_dim, -1)
    return x + pe_2d[None].astype(x.dtype)


if __name__ == "__main__":
    d_model = 128
    max_len = 200000          # same as the module's __init__ (only a prefix is used)
    freq_dim = 8
    time_dim = 16
    B = 2

    pe_1d = make_pe_1d(max_len, d_model)
    key = jax.random.PRNGKey(0)

    # --- f32 case, x donated so input_output_aliases actually aliases in HBM ---
    x = jax.random.normal(key, (B, freq_dim * time_dim, d_model), dtype=jnp.float32)
    ref = reference(x, pe_1d, freq_dim, time_dim)              # compute before donating x
    fwd = jax.jit(freq2d_positional_encoding, static_argnums=(2, 3), donate_argnums=(0,))
    out = jax.block_until_ready(fwd(x, pe_1d, freq_dim, time_dim))
    assert out.shape == ref.shape and out.dtype == jnp.float32
    assert jnp.allclose(out, ref, atol=1e-5, rtol=1e-5), "f32 mismatch vs reference"

    # --- bf16 case (exercises dtype-aware tiling & single-cast pe table) ---
    xb = jax.random.normal(jax.random.PRNGKey(1),
                           (B, freq_dim * time_dim, d_model), dtype=jnp.bfloat16)
    ref_b = reference(xb, pe_1d, freq_dim, time_dim)
    fwd_b = jax.jit(freq2d_positional_encoding, static_argnums=(2, 3), donate_argnums=(0,))
    out_b = jax.block_until_ready(fwd_b(xb, pe_1d, freq_dim, time_dim))
    assert out_b.dtype == jnp.bfloat16
    assert jnp.allclose(out_b.astype(jnp.float32), ref_b.astype(jnp.float32),
                        atol=2e-2, rtol=2e-2), "bf16 mismatch vs reference"

    print("KERNEL_OK")
</pallas_src>

<mosaic_0001>
module attributes {stable_mosaic.version = 11 : i64} {
  func.func @_add_pe_kernel(%arg0: i32, %arg1: i32, %arg2: memref<2x8192xf32, #tpu.memory_space<vmem>>, %arg3: memref<1x8192xf32, #tpu.memory_space<vmem>>, %arg4: memref<2x8192xf32, #tpu.memory_space<vmem>>) attributes {dimension_semantics = [#tpu.dimension_semantics<parallel>, #tpu.dimension_semantics<parallel>], iteration_bounds = array<i64: 2, 1>, scalar_prefetch = 0 : i64, scratch_operands = 0 : i64, tpu.core_type = #tpu.core_type<tc>, window_params = [{transform_indices = @transform_0, window_bounds = array<i64: 2, 8192>}, {transform_indices = @transform_1, window_bounds = array<i64: 1, 8192>}, {transform_indices = @transform_2, window_bounds = array<i64: 2, 8192>}]} {
    %c0 = arith.constant 0 : index
    %c0_0 = arith.constant 0 : index
    %0 = vector.load %arg2[%c0, %c0_0] : memref<2x8192xf32, #tpu.memory_space<vmem>>, vector<2x8192xf32>
    %c0_1 = arith.constant 0 : index
    %c0_2 = arith.constant 0 : index
    %1 = vector.load %arg3[%c0_1, %c0_2] : memref<1x8192xf32, #tpu.memory_space<vmem>>, vector<1x8192xf32>
    %2 = vector.broadcast %1 : vector<1x8192xf32> to vector<2x8192xf32>
    %3 = arith.addf %0, %2 : vector<2x8192xf32>
    %c0_3 = arith.constant 0 : index
    %c0_4 = arith.constant 0 : index
    %4 = vector.load %arg4[%c0_3, %c0_4] : memref<2x8192xf32, #tpu.memory_space<vmem>>, vector<2x8192xf32>
    tpu.vector_store %arg4[%c0_3, %c0_4], %3 {strides = array<i32>} : memref<2x8192xf32, #tpu.memory_space<vmem>>, vector<2x8192xf32>,
    return
  }
  func.func @transform_0(%arg0: i32, %arg1: i32) -> (i32, i32) {
    %c0_i32 = arith.constant 0 : i32
    return %arg1, %arg0 : i32, i32
  }
  func.func @transform_1(%arg0: i32, %arg1: i32) -> (i32, i32) {
    %c0_i32 = arith.constant 0 : i32
    %c0_i32_0 = arith.constant 0 : i32
    return %c0_i32, %arg0 : i32, i32
  }
  func.func @transform_2(%arg0: i32, %arg1: i32) -> (i32, i32) {
    %c0_i32 = arith.constant 0 : i32
    return %arg1, %arg0 : i32, i32
  }
}

</mosaic_0001>

<llo_original>
// kernel: freq2d_positional_encoding.1
$region0: #{freq2d_positional_encoding.1}
  #allocation0 [shape = 'u32[]', space=smem, size = 0x4, offset = 0x4, fixed_abs, tag = 'smem constant byte address 0x4 - core index']
  #allocation1 [shape = 'u32[144,128]{1,0:T(1,128)}', space=vmem, size = 0x12000, scoped, tag = 'internal scratch']
  %s0 = inlined_call_operand.vmem [shape: f32[2,16384], index: 0, kind: input, shape index: {}, may-alias: {0,2}]
  %s1 = inlined_call_operand.vmem [shape: f32[1,16384], index: 1, kind: input, shape index: {}]
  %s2 = inlined_call_operand.vmem [shape: f32[2,16384], index: 2, kind: output, shape index: {}, may-alias: {0,2}]
  %s3 = sld [smem:[#allocation0]]
  $region41: #{freq2d_positional_encoding.1} parent=0
    _
  %s5 = ssub.s32 1, %s3
  %s6 = scalar_select 0, %s5, %s3
  loop: start=0, step=1, limit=4
  $region2: #{freq2d_positional_encoding.1} parent=0 // loop_pre_header
    _
  $region3: #{freq2d_positional_encoding.1} parent=0 // loop_header
    %s8 = sphi 0, %s12
    %p9 = scmp.ge.s32.totalorder %s8, 4
    %s15 = sphi 0, %s27
    %s16 = sphi 0, %s23
    %s17 = sphi 0, %s15
    %s18 = sphi 0, %s16
    %s19 = sphi 0, %s17
    %s20 = sphi 0, %s18
    %s32 = sphi 0, %s34
    %s35 = sphi 0, %s32
    %s36 = sphi 0, %s35
    %s52 = sphi 0, %s36
    %s58 = sphi 0, %s60
    %s61 = sphi 0, %s58
    %s62 = sphi 0, %s61
    %s78 = sphi 0, %s62
    %s86 = sphi 0, %s88
    %s89 = sphi 0, %s86
    %s90 = sphi 0, %s89
    %s106 = sphi 0, %s90
  $region4: #{freq2d_positional_encoding.1} parent=0 // loop_header_branch
    %11 = sbr.rel (%p9) target = $region8
  $region5: #{freq2d_positional_encoding.1} parent=0 // loop_body
    %s13 = ssub.s32 %s8, 1
    %s14 = ssub.s32 %s8, 2
    %s21 = sadd.s32 1, %s16
    %p22 = scmp.ge.s32.totalorder %s21, 1
    %s23 = scalar_select %p22, 0, %s21
    %s24 = sadd.s32 1, %s15
    %s25 = scalar_select %p22, %s24, %s15
    %p26 = scmp.ge.s32.totalorder %s25, 2
    %s27 = scalar_select %p26, 0, %s25
    %s28 = ssub.s32 %s16, %s23
    %s29 = ssub.s32 %s15, %s27
    %s30 = sor.u32 %s28, %s29
    %p31 = scmp.eq.s32.totalorder %s30, 0
    %s33 = sadd.s32 %s32, 1
    %s34 = scalar_select %p31, %s32, %s33
    %p37 = pneg %p31
    %p38 = scmp.eq.s32.totalorder %s8, 1
    %p39 = por %p37, %p38
    %p40 = scmp.ne.s32.totalorder %s32, %s35
    %p41 = scmp.eq.s32.totalorder %s8, 0
    %p42 = por %p40, %p41
    %p43 = scmp.ne.s32.totalorder %s32, %s35
    %p44 = scmp.eq.s32.totalorder %s13, 1
    %p45 = por %p43, %p44
    %p46 = scmp.ne.s32.totalorder %s35, %s36
    %p47 = scmp.eq.s32.totalorder %s13, 0
    %p48 = por %p46, %p47
    %p49 = scmp.ne.s32.totalorder %s35, %s36
    %p50 = scmp.eq.s32.totalorder %s14, 1
    %p51 = por %p49, %p50
    %p53 = scmp.ne.s32.totalorder %s36, %s52
    %p54 = scmp.eq.s32.totalorder %s14, 0
    %p55 = por %p53, %p54
    %s56 = ssub.s32 %s15, %s27
    %p57 = scmp.eq.s32.totalorder %s56, 0
    %s59 = sadd.s32 %s58, 1
    %s60 = scalar_select %p57, %s58, %s59
    %p63 = pneg %p57
    %p64 = scmp.eq.s32.totalorder %s8, 1
    %p65 = por %p63, %p64
    %p66 = scmp.ne.s32.totalorder %s58, %s61
    %p67 = scmp.eq.s32.totalorder %s8, 0
    %p68 = por %p66, %p67
    %p69 = scmp.ne.s32.totalorder %s58, %s61
    %p70 = scmp.eq.s32.totalorder %s13, 1
    %p71 = por %p69, %p70
    %p72 = scmp.ne.s32.totalorder %s61, %s62
    %p73 = scmp.eq.s32.totalorder %s13, 0
    %p74 = por %p72, %p73
    %p75 = scmp.ne.s32.totalorder %s61, %s62
    %p76 = scmp.eq.s32.totalorder %s14, 1
    %p77 = por %p75, %p76
    %p79 = scmp.ne.s32.totalorder %s62, %s78
    %p80 = scmp.eq.s32.totalorder %s14, 0
    %p81 = por %p79, %p80
    %s82 = ssub.s32 %s16, %s23
    %s83 = ssub.s32 %s15, %s27
    %s84 = sor.u32 %s82, %s83
    %p85 = scmp.eq.s32.totalorder %s84, 0
    %s87 = sadd.s32 %s86, 1
    %s88 = scalar_select %p85, %s86, %s87
    %p91 = pneg %p85
    %p92 = scmp.eq.s32.totalorder %s8, 1
    %p93 = por %p91, %p92
    %p94 = scmp.ne.s32.totalorder %s86, %s89
    %p95 = scmp.eq.s32.totalorder %s8, 0
    %p96 = por %p94, %p95
    %p97 = scmp.ne.s32.totalorder %s86, %s89
    %p98 = scmp.eq.s32.totalorder %s13, 1
    %p99 = por %p97, %p98
    %p100 = scmp.ne.s32.totalorder %s89, %s90
    %p101 = scmp.eq.s32.totalorder %s13, 0
    %p102 = por %p100, %p101
    %p103 = scmp.ne.s32.totalorder %s89, %s90
    %p104 = scmp.eq.s32.totalorder %s14, 1
    %p105 = por %p103, %p104
    %p107 = scmp.ne.s32.totalorder %s90, %s106
    %p108 = scmp.eq.s32.totalorder %s14, 0
    %p109 = por %p107, %p108
    %p110 = scmp.le.s32.totalorder 1, %s8
    %p111 = scmp.lt.s32.totalorder %s8, 3
    %p112 = pnand %p110, %p111
    %p113 = pneg %p112
    // Predicated region
    $region9: #{freq2d_positional_encoding.1} parent=5 // pred_check
      _
    $region10: #{freq2d_positional_encoding.1} parent=5 // pred_check_branch
      %115 = sbr.rel (%p112) target = $region12
    $region11: #{freq2d_positional_encoding.1} parent=5 // pred_region
      %s116 = ssub.s32 %s8, 1
    $region12: #{freq2d_positional_encoding.1} parent=5 // pred_fallthru
      _
    %p117 = scmp.lt.s32.totalorder %s8, 2
    // Predicated region
    $region13: #{freq2d_positional_encoding.1} parent=5 // pred_check
      %p118 = pneg %p117
    $region14: #{freq2d_positional_encoding.1} parent=5 // pred_check_branch
      %120 = sbr.rel (%p118) target = $region16
    $region15: #{freq2d_positional_encoding.1} parent=5 // pred_region
      // Predicated region
      $region17: #{freq2d_positional_encoding.1} parent=15 // pred_check
        %p121 = pneg %p42
      $region18: #{freq2d_positional_encoding.1} parent=15 // pred_check_branch
        %123 = sbr.rel (%p121) target = $region20
      $region19: #{freq2d_positional_encoding.1} parent=15 // pred_region
        %s124 = smul.u32 64, %s15
        %p125 = scmp.lt.s32.totalorder %s16, 0
        %s126 = scalar_select %p125, %s16, 0
        %p127 = scmp.lt.s32.totalorder %s124, 127
        %s128 = scalar_select %p127, %s124, 127
        %s129 = smul.addr %s126, 128
        %s130 = sadd.s32 %s128, %s129
        %s131 = smul.addr %s130, 2
        %s132 = scalar_lea.vmem %s0, %s131
        %s133 = smul.u32 64, %s15
      $region20: #{freq2d_positional_encoding.1} parent=15 // pred_fallthru
        _
      // Predicated region
      $region21: #{freq2d_positional_encoding.1} parent=15 // pred_check
        %p134 = pneg %p68
      $region22: #{freq2d_positional_encoding.1} parent=15 // pred_check_branch
        %136 = sbr.rel (%p134) target = $region24
      $region23: #{freq2d_positional_encoding.1} parent=15 // pred_region
        %s137 = smul.u32 64, %s15
        %p138 = scmp.lt.s32.totalorder %s137, 127
        %s139 = scalar_select %p138, %s137, 127
        %s140 = scalar_lea.vmem %s1, %s139
        %s141 = smul.u32 64, %s15
      $region24: #{freq2d_positional_encoding.1} parent=15 // pred_fallthru
        _
    $region16: #{freq2d_positional_encoding.1} parent=5 // pred_fallthru
      _
    %p142 = scmp.le.s32.totalorder 1, %s8
    %p143 = scmp.lt.s32.totalorder %s8, 3
    %p144 = pnand %p142, %p143
    %p145 = pneg %p144
    // Predicated region
    $region25: #{freq2d_positional_encoding.1} parent=5 // pred_check
      _
    $region26: #{freq2d_positional_encoding.1} parent=5 // pred_check_branch
      %147 = sbr.rel (%p144) target = $region28
    $region27: #{freq2d_positional_encoding.1} parent=5 // pred_region
      %s148 = ssub.s32 %s8, 1
      %s149 = smul.u32 64, %s17
      %p150 = scmp.lt.s32.totalorder %s18, 0
      %s151 = scalar_select %p150, %s18, 0
      %p152 = scmp.lt.s32.totalorder %s149, 127
      %s153 = scalar_select %p152, %s149, 127
      %s154 = smul.addr %s151, 128
      %s155 = sadd.s32 %s153, %s154
      %s156 = smul.addr %s155, 2
      %s157 = scalar_lea.vmem %s0, %s156
      %p158 = pneg %p48
      %p159 = pneg %p45
      %s160 = smul.u32 64, %s17
      %p161 = scmp.lt.s32.totalorder %s160, 127
      %s162 = scalar_select %p161, %s160, 127
      %s163 = scalar_lea.vmem %s1, %s162
      %p164 = pneg %p74
      %p165 = pneg %p71
      %p166 = pneg %p102
      %p167 = pneg %p99
      %s168 = smul.u32 64, %s17
      %p169 = scmp.lt.s32.totalorder %s18, 0
      %s170 = scalar_select %p169, %s18, 0
      %p171 = scmp.lt.s32.totalorder %s168, 127
      %s172 = scalar_select %p171, %s168, 127
      %s173 = smul.addr %s170, 128
      %s174 = sadd.s32 %s172, %s173
      %s175 = smul.addr %s174, 2
      %s176 = scalar_lea.vmem %s2, %s175
      %s177 = smul.u32 64, %s17
      %p178 = scmp.lt.s32.totalorder %s18, 0
      %s179 = scalar_select %p178, %s18, 0
      %p180 = scmp.lt.s32.totalorder %s177, 127
      %s181 = scalar_select %p180, %s177, 127
      %s182 = smul.addr %s179, 128
      %s183 = sadd.s32 %s181, %s182
      %s184 = smul.addr %s183, 2
      %s185 = scalar_lea.vmem %s0, %s184
      %s186 = smul.u32 64, %s17
      %s187 = smul.u32 64, %s17
      %p188 = scmp.lt.s32.totalorder %s187, 127
      %s189 = scalar_select %p188, %s187, 127
      %s190 = scalar_lea.vmem %s1, %s189
      %s191 = smul.u32 64, %s17
      %s192 = smul.u32 64, %s17
      %p193 = scmp.lt.s32.totalorder %s18, 0
      %s194 = scalar_select %p193, %s18, 0
      %p195 = scmp.lt.s32.totalorder %s192, 127
      %s196 = scalar_select %p195, %s192, 127
      %s197 = smul.addr %s194, 128
      %s198 = sadd.s32 %s196, %s197
      %s199 = smul.addr %s198, 2
      %s200 = scalar_lea.vmem %s2, %s199
      %s201 = smul.u32 64, %s17
      %v202 = vld [vmem:[%s185] sm:$0xff]
      %v203 = vld [vmem:[%s185 + $0x8] sm:$0xff]
      %v204 = vld [vmem:[%s185 + $0x10] sm:$0xff]
      %v205 = vld [vmem:[%s185 + $0x18] sm:$0xff]
      %v206 = vld [vmem:[%s185 + $0x20] sm:$0xff]
      %v207 = vld [vmem:[%s185 + $0x28] sm:$0xff]
      %v208 = vld [vmem:[%s185 + $0x30] sm:$0xff]
      %v209 = vld [vmem:[%s185 + $0x38] sm:$0xff]
      %v210 = vld [vmem:[%s185 + $0x40] sm:$0xff]
      %v211 = vld [vmem:[%s185 + $0x48] sm:$0xff]
      %v212 = vld [vmem:[%s185 + $0x50] sm:$0xff]
      %v213 = vld [vmem:[%s185 + $0x58] sm:$0xff]
      %v214 = vld [vmem:[%s185 + $0x60] sm:$0xff]
      %v215 = vld [vmem:[%s185 + $0x68] sm:$0xff]
      %v216 = vld [vmem:[%s185 + $0x70] sm:$0xff]
      %v217 = vld [vmem:[%s185 + $0x78] sm:$0xff]
      %v218 = vld [vmem:[%s190] sm:$0xff]
      %v219 = vld [vmem:[%s190 + $0x8] sm:$0xff]
      %v220 = vld [vmem:[%s190 + $0x10] sm:$0xff]
      %v221 = vld [vmem:[%s190 + $0x18] sm:$0xff]
      %v222 = vld [vmem:[%s190 + $0x20] sm:$0xff]
      %v223 = vld [vmem:[%s190 + $0x28] sm:$0xff]
      %v224 = vld [vmem:[%s190 + $0x30] sm:$0xff]
      %v225 = vld [vmem:[%s190 + $0x38] sm:$0xff]
      %v234 = vlaneseq
      %v235 = vshrl.u32 %v234, 7
      %v236 = vsub.s32 0, %v235
      %v237 = vrot.slane %v218, %v236
      %v238 = vlaneseq
      %v239 = vshrl.u32 %v238, 7
      %v240 = vsub.s32 1, %v239
      %v241 = vrot.slane %v218, %v240
      %v242 = vlaneseq
      %v243 = vshrl.u32 %v242, 7
      %v244 = vsub.s32 2, %v243
      %v245 = vrot.slane %v218, %v244
      %v246 = vlaneseq
      %v247 = vshrl.u32 %v246, 7
      %v248 = vsub.s32 3, %v247
      %v249 = vrot.slane %v218, %v248
      %v250 = vlaneseq
      %v251 = vshrl.u32 %v250, 7
      %v252 = vsub.s32 4, %v251
      %v253 = vrot.slane %v218, %v252
      %v254 = vlaneseq
      %v255 = vshrl.u32 %v254, 7
      %v256 = vsub.s32 5, %v255
      %v257 = vrot.slane %v218, %v256
      %v258 = vlaneseq
      %v259 = vshrl.u32 %v258, 7
      %v260 = vsub.s32 6, %v259
      %v261 = vrot.slane %v218, %v260
      %v262 = vlaneseq
      %v263 = vshrl.u32 %v262, 7
      %v264 = vsub.s32 7, %v263
      %v265 = vrot.slane %v218, %v264
      %v266 = vlaneseq
      %v267 = vshrl.u32 %v266, 7
      %v268 = vsub.s32 0, %v267
      %v269 = vrot.slane %v219, %v268
      %v270 = vlaneseq
      %v271 = vshrl.u32 %v270, 7
      %v272 = vsub.s32 1, %v271
      %v273 = vrot.slane %v219, %v272
      %v274 = vlaneseq
      %v275 = vshrl.u32 %v274, 7
      %v276 = vsub.s32 2, %v275
      %v277 = vrot.slane %v219, %v276
      %v278 = vlaneseq
      %v279 = vshrl.u32 %v278, 7
      %v280 = vsub.s32 3, %v279
      %v281 = vrot.slane %v219, %v280
      %v282 = vlaneseq
      %v283 = vshrl.u32 %v282, 7
      %v284 = vsub.s32 4, %v283
      %v285 = vrot.slane %v219, %v284
      %v286 = vlaneseq
      %v287 = vshrl.u32 %v286, 7
      %v288 = vsub.s32 5, %v287
      %v289 = vrot.slane %v219, %v288
      %v290 = vlaneseq
      %v291 = vshrl.u32 %v290, 7
      %v292 = vsub.s32 6, %v291
      %v293 = vrot.slane %v219, %v292
      %v294 = vlaneseq
      %v295 = vshrl.u32 %v294, 7
      %v296 = vsub.s32 7, %v295
      %v297 = vrot.slane %v219, %v296
      %v298 = vlaneseq
      %v299 = vshrl.u32 %v298, 7
      %v300 = vsub.s32 0, %v299
      %v301 = vrot.slane %v220, %v300
      %v302 = vlaneseq
      %v303 = vshrl.u32 %v302, 7
      %v304 = vsub.s32 1, %v303
      %v305 = vrot.slane %v220, %v304
      %v306 = vlaneseq
      %v307 = vshrl.u32 %v306, 7
      %v308 = vsub.s32 2, %v307
      %v309 = vrot.slane %v220, %v308
      %v310 = vlaneseq
      %v311 = vshrl.u32 %v310, 7
      %v312 = vsub.s32 3, %v311
      %v313 = vrot.slane %v220, %v312
      %v314 = vlaneseq
      %v315 = vshrl.u32 %v314, 7
      %v316 = vsub.s32 4, %v315
      %v317 = vrot.slane %v220, %v316
      %v318 = vlaneseq
      %v319 = vshrl.u32 %v318, 7
      %v320 = vsub.s32 5, %v319
      %v321 = vrot.slane %v220, %v320
      %v322 = vlaneseq
      %v323 = vshrl.u32 %v322, 7
      %v324 = vsub.s32 6, %v323
      %v325 = vrot.slane %v220, %v324
      %v326 = vlaneseq
      %v327 = vshrl.u32 %v326, 7
      %v328 = vsub.s32 7, %v327
      %v329 = vrot.slane %v220, %v328
      %v330 = vlaneseq
      %v331 = vshrl.u32 %v330, 7
      %v332 = vsub.s32 0, %v331
      %v333 = vrot.slane %v221, %v332
      %v334 = vlaneseq
      %v335 = vshrl.u32 %v334, 7
      %v336 = vsub.s32 1, %v335
      %v337 = vrot.slane %v221, %v336
      %v338 = vlaneseq
      %v339 = vshrl.u32 %v338, 7
      %v340 = vsub.s32 2, %v339
      %v341 = vrot.slane %v221, %v340
      %v342 = vlaneseq
      %v343 = vshrl.u32 %v342, 7
      %v344 = vsub.s32 3, %v343
      %v345 = vrot.slane %v221, %v344
      %v346 = vlaneseq
      %v347 = vshrl.u32 %v346, 7
      %v348 = vsub.s32 4, %v347
      %v349 = vrot.slane %v221, %v348
      %v350 = vlaneseq
      %v351 = vshrl.u32 %v350, 7
      %v352 = vsub.s32 5, %v351
      %v353 = vrot.slane %v221, %v352
      %v354 = vlaneseq
      %v355 = vshrl.u32 %v354, 7
      %v356 = vsub.s32 6, %v355
      %v357 = vrot.slane %v221, %v356
      %v358 = vlaneseq
      %v359 = vshrl.u32 %v358, 7
      %v360 = vsub.s32 7, %v359
      %v361 = vrot.slane %v221, %v360
      %v362 = vlaneseq
      %v363 = vshrl.u32 %v362, 7
      %v364 = vsub.s32 0, %v363
      %v365 = vrot.slane %v222, %v364
      %v366 = vlaneseq
      %v367 = vshrl.u32 %v366, 7
      %v368 = vsub.s32 1, %v367
      %v369 = vrot.slane %v222, %v368
      %v370 = vlaneseq
      %v371 = vshrl.u32 %v370, 7
      %v372 = vsub.s32 2, %v371
      %v373 = vrot.slane %v222, %v372
      %v374 = vlaneseq
      %v375 = vshrl.u32 %v374, 7
      %v376 = vsub.s32 3, %v375
      %v377 = vrot.slane %v222, %v376
      %v378 = vlaneseq
      %v379 = vshrl.u32 %v378, 7
      %v380 = vsub.s32 4, %v379
      %v381 = vrot.slane %v222, %v380
      %v382 = vlaneseq
      %v383 = vshrl.u32 %v382, 7
      %v384 = vsub.s32 5, %v383
      %v385 = vrot.slane %v222, %v384
      %v386 = vlaneseq
      %v387 = vshrl.u32 %v386, 7
      %v388 = vsub.s32 6, %v387
      %v389 = vrot.slane %v222, %v388
      %v390 = vlaneseq
      %v391 = vshrl.u32 %v390, 7
      %v392 = vsub.s32 7, %v391
      %v393 = vrot.slane %v222, %v392
      %v394 = vlaneseq
      %v395 = vshrl.u32 %v394, 7
      %v396 = vsub.s32 0, %v395
      %v397 = vrot.slane %v223, %v396
      %v398 = vlaneseq
      %v399 = vshrl.u32 %v398, 7
      %v400 = vsub.s32 1, %v399
      %v401 = vrot.slane %v223, %v400
      %v402 = vlaneseq
      %v403 = vshrl.u32 %v402, 7
      %v404 = vsub.s32 2, %v403
      %v405 = vrot.slane %v223, %v404
      %v406 = vlaneseq
      %v407 = vshrl.u32 %v406, 7
      %v408 = vsub.s32 3, %v407
      %v409 = vrot.slane %v223, %v408
      %v410 = vlaneseq
      %v411 = vshrl.u32 %v410, 7
      %v412 = vsub.s32 4, %v411
      %v413 = vrot.slane %v223, %v412
      %v414 = vlaneseq
      %v415 = vshrl.u32 %v414, 7
      %v416 = vsub.s32 5, %v415
      %v417 = vrot.slane %v223, %v416
      %v418 = vlaneseq
      %v419 = vshrl.u32 %v418, 7
      %v420 = vsub.s32 6, %v419
      %v421 = vrot.slane %v223, %v420
      %v422 = vlaneseq
      %v423 = vshrl.u32 %v422, 7
      %v424 = vsub.s32 7, %v423
      %v425 = vrot.slane %v223, %v424
      %v426 = vlaneseq
      %v427 = vshrl.u32 %v426, 7
      %v428 = vsub.s32 0, %v427
      %v429 = vrot.slane %v224, %v428
      %v430 = vlaneseq
      %v431 = vshrl.u32 %v430, 7
      %v432 = vsub.s32 1, %v431
      %v433 = vrot.slane %v224, %v432
      %v434 = vlaneseq
      %v435 = vshrl.u32 %v434, 7
      %v436 = vsub.s32 2, %v435
      %v437 = vrot.slane %v224, %v436
      %v438 = vlaneseq
      %v439 = vshrl.u32 %v438, 7
      %v440 = vsub.s32 3, %v439
      %v441 = vrot.slane %v224, %v440
      %v442 = vlaneseq
      %v443 = vshrl.u32 %v442, 7
      %v444 = vsub.s32 4, %v443
      %v445 = vrot.slane %v224, %v444
      %v446 = vlaneseq
      %v447 = vshrl.u32 %v446, 7
      %v448 = vsub.s32 5, %v447
      %v449 = vrot.slane %v224, %v448
      %v450 = vlaneseq
      %v451 = vshrl.u32 %v450, 7
      %v452 = vsub.s32 6, %v451
      %v453 = vrot.slane %v224, %v452
      %v454 = vlaneseq
      %v455 = vshrl.u32 %v454, 7
      %v456 = vsub.s32 7, %v455
      %v457 = vrot.slane %v224, %v456
      %v458 = vlaneseq
      %v459 = vshrl.u32 %v458, 7
      %v460 = vsub.s32 0, %v459
      %v461 = vrot.slane %v225, %v460
      %v462 = vlaneseq
      %v463 = vshrl.u32 %v462, 7
      %v464 = vsub.s32 1, %v463
      %v465 = vrot.slane %v225, %v464
      %v466 = vlaneseq
      %v467 = vshrl.u32 %v466, 7
      %v468 = vsub.s32 2, %v467
      %v469 = vrot.slane %v225, %v468
      %v470 = vlaneseq
      %v471 = vshrl.u32 %v470, 7
      %v472 = vsub.s32 3, %v471
      %v473 = vrot.slane %v225, %v472
      %v474 = vlaneseq
      %v475 = vshrl.u32 %v474, 7
      %v476 = vsub.s32 4, %v475
      %v477 = vrot.slane %v225, %v476
      %v478 = vlaneseq
      %v479 = vshrl.u32 %v478, 7
      %v480 = vsub.s32 5, %v479
      %v481 = vrot.slane %v225, %v480
      %v482 = vlaneseq
      %v483 = vshrl.u32 %v482, 7
      %v484 = vsub.s32 6, %v483
      %v485 = vrot.slane %v225, %v484
      %v486 = vlaneseq
      %v487 = vshrl.u32 %v486, 7
      %v488 = vsub.s32 7, %v487
      %v489 = vrot.slane %v225, %v488
      %v490 = vcombine.low %v237, %v241
      %v491 = vcombine.low %v245, %v249
      %v493 = vunpack.c.l.s4 1983009808
      %v494 = vunpack.c.0.s8 %v493
      %v495 = vlaneseq
      %v496 = vshrl.u32 %v495, 7
      %v497 = vsub.s32 %v494, %v496
      %v498 = vrot.slane %v490, %v497
      %v500 = vunpack.c.l.s4 1983009808
      %v501 = vunpack.c.0.s8 %v500
      %v502 = vlaneseq
      %v503 = vshrl.u32 %v502, 7
      %v504 = vsub.s32 %v501, %v503
      %v505 = vrot.slane %v491, %v504
      %v506 = vcombine.low %v498, %v505
      %v507 = vcombine.low %v253, %v257
      %v508 = vcombine.low %v261, %v265
      %v510 = vunpack.c.l.s4 1983009808
      %v511 = vunpack.c.0.s8 %v510
      %v512 = vlaneseq
      %v513 = vshrl.u32 %v512, 7
      %v514 = vsub.s32 %v511, %v513
      %v515 = vrot.slane %v507, %v514
      %v517 = vunpack.c.l.s4 1983009808
      %v518 = vunpack.c.0.s8 %v517
      %v519 = vlaneseq
      %v520 = vshrl.u32 %v519, 7
      %v521 = vsub.s32 %v518, %v520
      %v522 = vrot.slane %v508, %v521
      %v523 = vcombine.low %v515, %v522
      %v524 = vcombine.low %v269, %v273
      %v525 = vcombine.low %v277, %v281
      %v527 = vunpack.c.l.s4 1983009808
      %v528 = vunpack.c.0.s8 %v527
      %v529 = vlaneseq
      %v530 = vshrl.u32 %v529, 7
      %v531 = vsub.s32 %v528, %v530
      %v532 = vrot.slane %v524, %v531
      %v534 = vunpack.c.l.s4 1983009808
      %v535 = vunpack.c.0.s8 %v534
      %v536 = vlaneseq
      %v537 = vshrl.u32 %v536, 7
      %v538 = vsub.s32 %v535, %v537
      %v539 = vrot.slane %v525, %v538
      %v540 = vcombine.low %v532, %v539
      %v541 = vcombine.low %v285, %v289
      %v542 = vcombine.low %v293, %v297
      %v544 = vunpack.c.l.s4 1983009808
      %v545 = vunpack.c.0.s8 %v544
      %v546 = vlaneseq
      %v547 = vshrl.u32 %v546, 7
      %v548 = vsub.s32 %v545, %v547
      %v549 = vrot.slane %v541, %v548
      %v551 = vunpack.c.l.s4 1983009808
      %v552 = vunpack.c.0.s8 %v551
      %v553 = vlaneseq
      %v554 = vshrl.u32 %v553, 7
      %v555 = vsub.s32 %v552, %v554
      %v556 = vrot.slane %v542, %v555
      %v557 = vcombine.low %v549, %v556
      %v558 = vcombine.low %v301, %v305
      %v559 = vcombine.low %v309, %v313
      %v561 = vunpack.c.l.s4 1983009808
      %v562 = vunpack.c.0.s8 %v561
      %v563 = vlaneseq
      %v564 = vshrl.u32 %v563, 7
      %v565 = vsub.s32 %v562, %v564
      %v566 = vrot.slane %v558, %v565
      %v568 = vunpack.c.l.s4 1983009808
      %v569 = vunpack.c.0.s8 %v568
      %v570 = vlaneseq
      %v571 = vshrl.u32 %v570, 7
      %v572 = vsub.s32 %v569, %v571
      %v573 = vrot.slane %v559, %v572
      %v574 = vcombine.low %v566, %v573
      %v575 = vcombine.low %v317, %v321
      %v576 = vcombine.low %v325, %v329
      %v578 = vunpack.c.l.s4 1983009808
      %v579 = vunpack.c.0.s8 %v578
      %v580 = vlaneseq
      %v581 = vshrl.u32 %v580, 7
      %v582 = vsub.s32 %v579, %v581
      %v583 = vrot.slane %v575, %v582
      %v585 = vunpack.c.l.s4 1983009808
      %v586 = vunpack.c.0.s8 %v585
      %v587 = vlaneseq
      %v588 = vshrl.u32 %v587, 7
      %v589 = vsub.s32 %v586, %v588
      %v590 = vrot.slane %v576, %v589
      %v591 = vcombine.low %v583, %v590
      %v592 = vcombine.low %v333, %v337
      %v593 = vcombine.low %v341, %v345
      %v595 = vunpack.c.l.s4 1983009808
      %v596 = vunpack.c.0.s8 %v595
      %v597 = vlaneseq
      %v598 = vshrl.u32 %v597, 7
      %v599 = vsub.s32 %v596, %v598
      %v600 = vrot.slane %v592, %v599
      %v602 = vunpack.c.l.s4 1983009808
      %v603 = vunpack.c.0.s8 %v602
      %v604 = vlaneseq
      %v605 = vshrl.u32 %v604, 7
      %v606 = vsub.s32 %v603, %v605
      %v607 = vrot.slane %v593, %v606
      %v608 = vcombine.low %v600, %v607
      %v609 = vcombine.low %v349, %v353
      %v610 = vcombine.low %v357, %v361
      %v612 = vunpack.c.l.s4 1983009808
      %v613 = vunpack.c.0.s8 %v612
      %v614 = vlaneseq
      %v615 = vshrl.u32 %v614, 7
      %v616 = vsub.s32 %v613, %v615
      %v617 = vrot.slane %v609, %v616
      %v619 = vunpack.c.l.s4 1983009808
      %v620 = vunpack.c.0.s8 %v619
      %v621 = vlaneseq
      %v622 = vshrl.u32 %v621, 7
      %v623 = vsub.s32 %v620, %v622
      %v624 = vrot.slane %v610, %v623
      %v625 = vcombine.low %v617, %v624
      %v626 = vcombine.low %v365, %v369
      %v627 = vcombine.low %v373, %v377
      %v629 = vunpack.c.l.s4 1983009808
      %v630 = vunpack.c.0.s8 %v629
      %v631 = vlaneseq
      %v632 = vshrl.u32 %v631, 7
      %v633 = vsub.s32 %v630, %v632
      %v634 = vrot.slane %v626, %v633
      %v636 = vunpack.c.l.s4 1983009808
      %v637 = vunpack.c.0.s8 %v636
      %v638 = vlaneseq
      %v639 = vshrl.u32 %v638, 7
      %v640 = vsub.s32 %v637, %v639
      %v641 = vrot.slane %v627, %v640
      %v642 = vcombine.low %v634, %v641
      %v643 = vcombine.low %v381, %v385
      %v644 = vcombine.low %v389, %v393
      %v646 = vunpack.c.l.s4 1983009808
      %v647 = vunpack.c.0.s8 %v646
      %v648 = vlaneseq
      %v649 = vshrl.u32 %v648, 7
      %v650 = vsub.s32 %v647, %v649
      %v651 = vrot.slane %v643, %v650
      %v653 = vunpack.c.l.s4 1983009808
      %v654 = vunpack.c.0.s8 %v653
      %v655 = vlaneseq
      %v656 = vshrl.u32 %v655, 7
      %v657 = vsub.s32 %v654, %v656
      %v658 = vrot.slane %v644, %v657
      %v659 = vcombine.low %v651, %v658
      %v660 = vcombine.low %v397, %v401
      %v661 = vcombine.low %v405, %v409
      %v663 = vunpack.c.l.s4 1983009808
      %v664 = vunpack.c.0.s8 %v663
      %v665 = vlaneseq
      %v666 = vshrl.u32 %v665, 7
      %v667 = vsub.s32 %v664, %v666
      %v668 = vrot.slane %v660, %v667
      %v670 = vunpack.c.l.s4 1983009808
      %v671 = vunpack.c.0.s8 %v670
      %v672 = vlaneseq
      %v673 = vshrl.u32 %v672, 7
      %v674 = vsub.s32 %v671, %v673
      %v675 = vrot.slane %v661, %v674
      %v676 = vcombine.low %v668, %v675
      %v677 = vcombine.low %v413, %v417
      %v678 = vcombine.low %v421, %v425
      %v680 = vunpack.c.l.s4 1983009808
      %v681 = vunpack.c.0.s8 %v680
      %v682 = vlaneseq
      %v683 = vshrl.u32 %v682, 7
      %v684 = vsub.s32 %v681, %v683
      %v685 = vrot.slane %v677, %v684
      %v687 = vunpack.c.l.s4 1983009808
      %v688 = vunpack.c.0.s8 %v687
      %v689 = vlaneseq
      %v690 = vshrl.u32 %v689, 7
      %v691 = vsub.s32 %v688, %v690
      %v692 = vrot.slane %v678, %v691
      %v693 = vcombine.low %v685, %v692
      %v694 = vcombine.low %v429, %v433
      %v695 = vcombine.low %v437, %v441
      %v697 = vunpack.c.l.s4 1983009808
      %v698 = vunpack.c.0.s8 %v697
      %v699 = vlaneseq
      %v700 = vshrl.u32 %v699, 7
      %v701 = vsub.s32 %v698, %v700
      %v702 = vrot.slane %v694, %v701
      %v704 = vunpack.c.l.s4 1983009808
      %v705 = vunpack.c.0.s8 %v704
      %v706 = vlaneseq
      %v707 = vshrl.u32 %v706, 7
      %v708 = vsub.s32 %v705, %v707
      %v709 = vrot.slane %v695, %v708
      %v710 = vcombine.low %v702, %v709
      %v711 = vcombine.low %v445, %v449
      %v712 = vcombine.low %v453, %v457
      %v714 = vunpack.c.l.s4 1983009808
      %v715 = vunpack.c.0.s8 %v714
      %v716 = vlaneseq
      %v717 = vshrl.u32 %v716, 7
      %v718 = vsub.s32 %v715, %v717
      %v719 = vrot.slane %v711, %v718
      %v721 = vunpack.c.l.s4 1983009808
      %v722 = vunpack.c.0.s8 %v721
      %v723 = vlaneseq
      %v724 = vshrl.u32 %v723, 7
      %v725 = vsub.s32 %v722, %v724
      %v726 = vrot.slane %v712, %v725
      %v727 = vcombine.low %v719, %v726
      %v728 = vcombine.low %v461, %v465
      %v729 = vcombine.low %v469, %v473
      %v731 = vunpack.c.l.s4 1983009808
      %v732 = vunpack.c.0.s8 %v731
      %v733 = vlaneseq
      %v734 = vshrl.u32 %v733, 7
      %v735 = vsub.s32 %v732, %v734
      %v736 = vrot.slane %v728, %v735
      %v738 = vunpack.c.l.s4 1983009808
      %v739 = vunpack.c.0.s8 %v738
      %v740 = vlaneseq
      %v741 = vshrl.u32 %v740, 7
      %v742 = vsub.s32 %v739, %v741
      %v743 = vrot.slane %v729, %v742
      %v744 = vcombine.low %v736, %v743
      %v745 = vcombine.low %v477, %v481
      %v746 = vcombine.low %v485, %v489
      %v748 = vunpack.c.l.s4 1983009808
      %v749 = vunpack.c.0.s8 %v748
      %v750 = vlaneseq
      %v751 = vshrl.u32 %v750, 7
      %v752 = vsub.s32 %v749, %v751
      %v753 = vrot.slane %v745, %v752
      %v755 = vunpack.c.l.s4 1983009808
      %v756 = vunpack.c.0.s8 %v755
      %v757 = vlaneseq
      %v758 = vshrl.u32 %v757, 7
      %v759 = vsub.s32 %v756, %v758
      %v760 = vrot.slane %v746, %v759
      %v761 = vcombine.low %v753, %v760
      %v778 = vadd.f32 %v202, %v506
      %v779 = vadd.f32 %v203, %v523
      %v780 = vadd.f32 %v204, %v540
      %v781 = vadd.f32 %v205, %v557
      %v782 = vadd.f32 %v206, %v574
      %v783 = vadd.f32 %v207, %v591
      %v784 = vadd.f32 %v208, %v608
      %v785 = vadd.f32 %v209, %v625
      %v786 = vadd.f32 %v210, %v642
      %v787 = vadd.f32 %v211, %v659
      %v788 = vadd.f32 %v212, %v676
      %v789 = vadd.f32 %v213, %v693
      %v790 = vadd.f32 %v214, %v710
      %v791 = vadd.f32 %v215, %v727
      %v792 = vadd.f32 %v216, %v744
      %v793 = vadd.f32 %v217, %v761
      %794 = vst [vmem:[%s200] sm:$0xff] %v778
      %795 = vst [vmem:[%s200 + $0x8] sm:$0xff] %v779
      %796 = vst [vmem:[%s200 + $0x10] sm:$0xff] %v780
      %797 = vst [vmem:[%s200 + $0x18] sm:$0xff] %v781
      %798 = vst [vmem:[%s200 + $0x20] sm:$0xff] %v782
      %799 = vst [vmem:[%s200 + $0x28] sm:$0xff] %v783
      %800 = vst [vmem:[%s200 + $0x30] sm:$0xff] %v784
      %801 = vst [vmem:[%s200 + $0x38] sm:$0xff] %v785
      %802 = vst [vmem:[%s200 + $0x40] sm:$0xff] %v786
      %803 = vst [vmem:[%s200 + $0x48] sm:$0xff] %v787
      %804 = vst [vmem:[%s200 + $0x50] sm:$0xff] %v788
      %805 = vst [vmem:[%s200 + $0x58] sm:$0xff] %v789
      %806 = vst [vmem:[%s200 + $0x60] sm:$0xff] %v790
      %807 = vst [vmem:[%s200 + $0x68] sm:$0xff] %v791
      %808 = vst [vmem:[%s200 + $0x70] sm:$0xff] %v792
      %809 = vst [vmem:[%s200 + $0x78] sm:$0xff] %v793
      %s810 = smul.u32 64, %s17
      %p811 = scmp.lt.s32.totalorder %s18, 0
      %s812 = scalar_select %p811, %s18, 0
      %p813 = scmp.lt.s32.totalorder %s810, 127
      %s814 = scalar_select %p813, %s810, 127
      %s815 = smul.addr %s812, 128
      %s816 = sadd.s32 %s814, %s815
      %s817 = smul.addr %s816, 2
      %s818 = scalar_lea.vmem %s2, %s817
      // Predicated region
      $region29: #{freq2d_positional_encoding.1} parent=27 // pred_check
        %p819 = pneg %p99
      $region30: #{freq2d_positional_encoding.1} parent=27 // pred_check_branch
        %821 = sbr.rel (%p819) target = $region32
      $region31: #{freq2d_positional_encoding.1} parent=27 // pred_region
        %s822 = smul.u32 64, %s17
      $region32: #{freq2d_positional_encoding.1} parent=27 // pred_fallthru
        _
    $region28: #{freq2d_positional_encoding.1} parent=5 // pred_fallthru
      _
    %p823 = scmp.le.s32.totalorder 2, %s8
    // Predicated region
    $region33: #{freq2d_positional_encoding.1} parent=5 // pred_check
      %p824 = pneg %p823
    $region34: #{freq2d_positional_encoding.1} parent=5 // pred_check_branch
      %826 = sbr.rel (%p824) target = $region36
    $region35: #{freq2d_positional_encoding.1} parent=5 // pred_region
      %s827 = ssub.s32 %s8, 2
      // Predicated region
      $region37: #{freq2d_positional_encoding.1} parent=35 // pred_check
        %p828 = pneg %p105
      $region38: #{freq2d_positional_encoding.1} parent=35 // pred_check_branch
        %830 = sbr.rel (%p828) target = $region40
      $region39: #{freq2d_positional_encoding.1} parent=35 // pred_region
        %s831 = smul.u32 64, %s19
        %p832 = scmp.lt.s32.totalorder %s20, 0
        %s833 = scalar_select %p832, %s20, 0
        %p834 = scmp.lt.s32.totalorder %s831, 127
        %s835 = scalar_select %p834, %s831, 127
        %s836 = smul.addr %s833, 128
        %s837 = sadd.s32 %s835, %s836
        %s838 = smul.addr %s837, 2
        %s839 = scalar_lea.vmem %s2, %s838
      $region40: #{freq2d_positional_encoding.1} parent=35 // pred_fallthru
        _
    $region36: #{freq2d_positional_encoding.1} parent=5 // pred_fallthru
      _
  $region6: #{freq2d_positional_encoding.1} parent=0 // loop_footer
    %s12 = sadd.s32 1, %s8
  $region7: #{freq2d_positional_encoding.1} parent=0 // loop_footer_branch
    %7 = sbr.rel target = $region3
  $region8: #{freq2d_positional_encoding.1} parent=0 // loop_exit
    _

</llo_original>
